<compile_context>
chip_gen: v7x
topology: tpu7x:2x2x1
jax: 0.10.0
libtpu: 0.0.40
codegen_flags: <defaults>
</compile_context>

<pallas_src>
from functools import partial

import jax
import jax.numpy as jnp
from jax import lax
from jax.experimental import pallas as pl
from jax.experimental.pallas import tpu as pltpu


DEFAULT_TILE_BYTES = 6 * 1024 * 1024      # per x block (Pallas double-buffers it)
VMEM_LIMIT_BYTES = 32 * 1024 * 1024       # <= scoped/physical limits on v5e/v6e/v7x


# ----------------------------------------------------------------------------
# Kernel 1: backbone partial sums.
#   grid = (B, S, ntps):  batch (parallel), hw-split (parallel, for v7x B==1),
#                         hw tiles (arbitrary reduction).
# Refs (leading unit dims squeezed via None in the BlockSpecs):
#   x_ref     : (Cin, thw)   pixels on the 128-lane axis
#   wct_ref   : (D, Cin)     backbone weight, pre-transposed in the wrapper
#   negbc_ref : (D, 1)       minus the backbone bias (bias fold: relu(p+b)=max(p,-b)+b)
#   out_ref   : (D, 1) f32   partial spatial sum for this (batch, split); resident
#                            accumulator across the "arbitrary" tile axis
# ----------------------------------------------------------------------------
def _backbone_kernel(x_ref, wct_ref, negbc_ref, out_ref, *, hw, thw, ntps, padded):
    s = pl.program_id(1)
    t = pl.program_id(2)

    @pl.when(t == 0)
    def _():
        out_ref[...] = jnp.zeros_like(out_ref)

    # (D, Cin) @ (Cin, thw) -> (D, thw); tiny contraction dim, MXU keeps VALU free.
    pre = jnp.dot(wct_ref[...], x_ref[...], preferred_element_type=jnp.float32)
    act = jnp.maximum(pre, negbc_ref[...])          # folded ReLU: max(p, -b)

    if not padded:
        out_ref[...] += jnp.sum(act, axis=-1, keepdims=True)
    else:
        start = (s * ntps + t) * thw                # global pixel offset (unclamped)
        is_full = start + thw <= hw

        @pl.when(is_full)
        def _():
            out_ref[...] += jnp.sum(act, axis=-1, keepdims=True)

        @pl.when(jnp.logical_not(is_full))
        def _():
            lane = lax.broadcasted_iota(jnp.int32, act.shape, 1)
            valid = lane < (hw - start)             # padded pixels contribute exactly 0
            out_ref[...] += jnp.sum(jnp.where(valid, act, 0.0),
                                    axis=-1, keepdims=True)


# ----------------------------------------------------------------------------
# Kernel 2: all cluster heads fused into one (tb, D) @ (D, H*K) matmul, tiled over B.
# ----------------------------------------------------------------------------
def _heads_kernel(feat_ref, whf_ref, bhf_ref, out_ref):
    out_ref[...] = (
        jnp.dot(feat_ref[...], whf_ref[...], preferred_element_type=jnp.float32)
        + bhf_ref[...]
    ).astype(out_ref.dtype)


# ----------------------------------------------------------------------------
# Wrappers
# ----------------------------------------------------------------------------
def _pick_hw_tile(hw, cin, itemsize, tile_bytes):
    """thw = full hw, or the largest 128-multiple under the VMEM budget (cdiv grid)."""
    cap = max(128, (tile_bytes // max(1, cin * itemsize)) // 128 * 128)
    if hw <= cap:
        return hw, 1                       # full-dim block is always legal
    return cap, pl.cdiv(hw, cap)           # 128-multiple block, masked tail tile


def _prepare(params):
    wc = params["wc"]                                   # (Cin, D)
    bc = params["bc"]                                   # (1, D)
    wh = params["wh"]                                   # (H, D, K)
    bh = params["bh"]                                   # (H, K)
    nheads, d, k = wh.shape
    wct = wc.T                                          # (D, Cin)
    negbc_col = -bc.reshape(d, 1)                       # (D, 1) folded-ReLU threshold
    bc_row = bc.reshape(1, d)                           # (1, D) added back post-reduction
    whf = jnp.transpose(wh, (1, 0, 2)).reshape(d, nheads * k)   # (D, H*K)
    bhf = bh.reshape(1, nheads * k)                     # (1, H*K)
    return wct, negbc_col, bc_row, whf, bhf


def _backbone_partials(x_nchw, wct, negbc_col, tile_bytes):
    B, C, H, W = x_nchw.shape
    hw = H * W
    D = wct.shape[0]
    x3 = x_nchw.reshape(B, C, hw)           # free reshape; HW stays on the lane axis
    # TODO(synk): optionally stream x as bf16 on v5e (HBM-bound there after bias fold).

    thw, nt_hw = _pick_hw_tile(hw, C, x3.dtype.itemsize, tile_bytes)
    # v7x megacore: with B == 1 a single parallel batch axis leaves a TensorCore idle,
    # so split the hw tiles across a second parallel axis; partials combined in finalize.
    S = 2 if (B == 1 and nt_hw >= 2) else 1
    ntps = pl.cdiv(nt_hw, S)
    padded = (S * ntps * thw != hw)

    if S == 1:
        x_map = lambda b, s, t: (b, 0, t)
    else:
        last = nt_hw - 1
        # Clamp so no DMA starts past the array; the kernel's mask zeroes the extras.
        x_map = lambda b, s, t: (b, 0, jnp.minimum(s * ntps + t, last))

    return pl.pallas_call(
        partial(_backbone_kernel, hw=hw, thw=thw, ntps=ntps, padded=padded),
        out_shape=jax.ShapeDtypeStruct((B, S, D, 1), jnp.float32),
        grid_spec=pltpu.PrefetchScalarGridSpec(
            num_scalar_prefetch=0,
            grid=(B, S, ntps),
            in_specs=[
                pl.BlockSpec((None, C, thw), x_map),
                pl.BlockSpec((D, C), lambda b, s, t: (0, 0)),
                pl.BlockSpec((D, 1), lambda b, s, t: (0, 0)),
            ],
            out_specs=pl.BlockSpec((None, None, D, 1),
                                   lambda b, s, t: (b, s, 0, 0)),
        ),
        compiler_params=pltpu.CompilerParams(
            dimension_semantics=("parallel", "parallel", "arbitrary"),
            vmem_limit_bytes=VMEM_LIMIT_BYTES),
    )(x3, wct, negbc_col)


def _backbone_features(x_nchw, wct, negbc_col, bc_row, tile_bytes):
    hw = x_nchw.shape[2] * x_nchw.shape[3]
    partials = _backbone_partials(x_nchw, wct, negbc_col, tile_bytes)   # (B, S, D, 1)
    sums = jnp.sum(partials[..., 0], axis=1)                            # (B, D), tiny
    # Finalize in XLA (negligible bytes): /hw plus the bias folded out of the hot loop.
    return sums * jnp.float32(1.0 / hw) + bc_row


def _heads(features, whf, bhf):
    B, D = features.shape
    HK = whf.shape[1]
    tb = B if B <= 128 else 128            # full-batch block, or 128-row tiles for big B
    return pl.pallas_call(
        _heads_kernel,
        out_shape=jax.ShapeDtypeStruct((B, HK), jnp.float32),
        grid_spec=pltpu.PrefetchScalarGridSpec(
            num_scalar_prefetch=0,
            grid=(pl.cdiv(B, tb),),
            in_specs=[
                pl.BlockSpec((tb, D), lambda i: (i, 0)),
                pl.BlockSpec((D, HK), lambda i: (0, 0)),
                pl.BlockSpec((1, HK), lambda i: (0, 0)),
            ],
            out_specs=pl.BlockSpec((tb, HK), lambda i: (i, 0)),
        ),
        compiler_params=pltpu.CompilerParams(
            dimension_semantics=("parallel",),
            vmem_limit_bytes=VMEM_LIMIT_BYTES),
    )(features, whf, bhf)


def _split_heads(logits, nheads, nclusters):
    return [logits[:, h * nclusters:(h + 1) * nclusters] for h in range(nheads)]


@partial(jax.jit, static_argnames=("forward_pass", "tile_bytes"))
def clustering_model_forward(x, params, forward_pass="default",
                             tile_bytes=DEFAULT_TILE_BYTES):
    """Mirror of ClusteringModel.forward.

    'default' / 'backbone' / 'return_all': x is NCHW (B, C, H, W).
    'head': x is already a feature tensor (B, D).
    """
    nheads, nclusters = params["bh"].shape
    wct, negbc_col, bc_row, whf, bhf = _prepare(params)

    if forward_pass == "default":
        feats = _backbone_features(x, wct, negbc_col, bc_row, tile_bytes)
        return _split_heads(_heads(feats, whf, bhf), nheads, nclusters)
    elif forward_pass == "backbone":
        return _backbone_features(x, wct, negbc_col, bc_row, tile_bytes)
    elif forward_pass == "head":
        return _split_heads(_heads(x, whf, bhf), nheads, nclusters)
    elif forward_pass == "return_all":
        feats = _backbone_features(x, wct, negbc_col, bc_row, tile_bytes)
        return {"features": feats,
                "output": _split_heads(_heads(feats, whf, bhf), nheads, nclusters)}
    else:
        raise ValueError("Invalid forward pass {}".format(forward_pass))


# ----------------------------------------------------------------------------
# Deterministic parameter init + pure-JAX reference + self-check
# ----------------------------------------------------------------------------
def init_params(key, c_in, backbone_dim, nclusters, nheads):
    k1, k2, k3, k4 = jax.random.split(key, 4)
    return {
        "wc": 0.1 * jax.random.normal(k1, (c_in, backbone_dim), jnp.float32),
        "bc": 0.1 * jax.random.normal(k2, (1, backbone_dim), jnp.float32),
        "wh": 0.1 * jax.random.normal(k3, (nheads, backbone_dim, nclusters), jnp.float32),
        "bh": 0.1 * jax.random.normal(k4, (nheads, nclusters), jnp.float32),
    }


def reference_features(x_nchw, params):
    B, C, H, W = x_nchw.shape
    xt = jnp.transpose(x_nchw, (0, 2, 3, 1)).reshape(B, H * W, C)
    pre = jnp.einsum("bpc,cd->bpd", xt, params["wc"]) + params["bc"][None]
    return jnp.mean(jnp.maximum(pre, 0.0), axis=1)          # (B, D)


def reference_forward(x_nchw, params):
    feats = reference_features(x_nchw, params)
    return [feats @ params["wh"][h] + params["bh"][h]
            for h in range(params["wh"].shape[0])]


if __name__ == "__main__":
    B, C, H, W = 2, 4, 16, 16
    backbone_dim, nclusters, nheads = 32, 10, 2

    key = jax.random.PRNGKey(0)
    kx, kx1, kp = jax.random.split(key, 3)
    x = jax.random.normal(kx, (B, C, H, W), jnp.float32)
    params = init_params(kp, C, backbone_dim, nclusters, nheads)

    # default path
    outs = clustering_model_forward(x, params, forward_pass="default")
    outs = [jax.block_until_ready(o) for o in outs]
    refs = reference_forward(x, params)
    for o, r in zip(outs, refs):
        assert o.shape == (B, nclusters), o.shape
        assert float(jnp.max(jnp.abs(o - r))) < 1e-4, float(jnp.max(jnp.abs(o - r)))

    # backbone path
    feats = jax.block_until_ready(
        clustering_model_forward(x, params, forward_pass="backbone"))
    assert feats.shape == (B, backbone_dim)
    assert float(jnp.max(jnp.abs(feats - reference_features(x, params)))) < 1e-4

    # head path (input is already features)
    head_outs = clustering_model_forward(feats, params, forward_pass="head")
    head_outs = [jax.block_until_ready(o) for o in head_outs]
    for h, o in enumerate(head_outs):
        r = feats @ params["wh"][h] + params["bh"][h]
        assert float(jnp.max(jnp.abs(o - r))) < 1e-4

    # return_all path
    all_out = clustering_model_forward(x, params, forward_pass="return_all")
    jax.block_until_ready(all_out["features"])
    for o in all_out["output"]:
        jax.block_until_ready(o)

    # B=1, hw not a multiple of 128, tiny tile budget: exercises the hw-split
    # ("v7x megacore") axis, the clamped index map and the masked tail tile.
    x1 = jax.random.normal(kx1, (1, C, 16, 17), jnp.float32)
    outs1 = clustering_model_forward(x1, params, forward_pass="default",
                                     tile_bytes=2048)
    outs1 = [jax.block_until_ready(o) for o in outs1]
    refs1 = reference_forward(x1, params)
    for o, r in zip(outs1, refs1):
        assert float(jnp.max(jnp.abs(o - r))) < 1e-4, float(jnp.max(jnp.abs(o - r)))

    print("KERNEL_OK")
</pallas_src>

<mosaic_0001>
module attributes {stable_mosaic.version = 11 : i64} {
  func.func @_backbone_kernel(%arg0: i32, %arg1: i32, %arg2: i32, %arg3: memref<1x4x256xf32, #tpu.memory_space<vmem>>, %arg4: memref<32x4xf32, #tpu.memory_space<vmem>>, %arg5: memref<32x1xf32, #tpu.memory_space<vmem>>, %arg6: memref<1x1x32x1xf32, #tpu.memory_space<vmem>>) attributes {dimension_semantics = [#tpu.dimension_semantics<parallel>, #tpu.dimension_semantics<parallel>, #tpu.dimension_semantics<arbitrary>], iteration_bounds = array<i64: 2, 1, 1>, scalar_prefetch = 0 : i64, scratch_operands = 0 : i64, tpu.core_type = #tpu.core_type<tc>, window_params = [{transform_indices = @transform_0, window_bounds = array<i64: 1, 4, 256>}, {pipeline_mode = #tpu.pipeline_mode<synchronous>, transform_indices = @transform_1, window_bounds = array<i64: 32, 4>}, {pipeline_mode = #tpu.pipeline_mode<synchronous>, transform_indices = @transform_2, window_bounds = array<i64: 32, 1>}, {transform_indices = @transform_3, window_bounds = array<i64: 1, 1, 32, 1>}]} {
    %c0_i32 = arith.constant 0 : i32
    %0 = arith.cmpi eq, %arg2, %c0_i32 : i32
    %1 = arith.extui %0 : i1 to i32
    %c0_i32_0 = arith.constant 0 : i32
    %2 = arith.cmpi ne, %1, %c0_i32_0 : i32
    scf.if %2 {
      %cst_16 = arith.constant 0.000000e+00 : f32
      %18 = vector.broadcast %cst_16 : f32 to vector<32x1xf32>
      %c0_17 = arith.constant 0 : index
      %c0_18 = arith.constant 0 : index
      %c0_19 = arith.constant 0 : index
      %c0_20 = arith.constant 0 : index
      %19 = vector.load %arg6[%c0_17, %c0_18, %c0_19, %c0_20] : memref<1x1x32x1xf32, #tpu.memory_space<vmem>>, vector<1x1x32x1xf32>
      %20 = vector.shape_cast %19 : vector<1x1x32x1xf32> to vector<32x1xf32>
      %21 = vector.shape_cast %18 : vector<32x1xf32> to vector<1x1x32x1xf32>
      tpu.vector_store %arg6[%c0_17, %c0_18, %c0_19, %c0_20], %21 {strides = array<i32>} : memref<1x1x32x1xf32, #tpu.memory_space<vmem>>, vector<1x1x32x1xf32>,
    } else {
    }
    %c0 = arith.constant 0 : index
    %c0_1 = arith.constant 0 : index
    %3 = vector.load %arg4[%c0, %c0_1] : memref<32x4xf32, #tpu.memory_space<vmem>>, vector<32x4xf32>
    %c0_2 = arith.constant 0 : index
    %c0_3 = arith.constant 0 : index
    %c0_4 = arith.constant 0 : index
    %4 = vector.load %arg3[%c0_2, %c0_3, %c0_4] : memref<1x4x256xf32, #tpu.memory_space<vmem>>, vector<1x4x256xf32>
    %5 = vector.shape_cast %4 : vector<1x4x256xf32> to vector<4x256xf32>
    %cst = arith.constant dense<0.000000e+00> : vector<32x256xf32>
    %6 = tpu.matmul %3, %5, %cst {dimension_numbers = #tpu.dot_dimension_numbers<[1], [0], [0], [1], [0, 0, 1, 1], [], []>} : vector<32x4xf32>, vector<4x256xf32>, vector<32x256xf32> -> vector<32x256xf32>
    %c0_5 = arith.constant 0 : index
    %c0_6 = arith.constant 0 : index
    %7 = vector.load %arg5[%c0_5, %c0_6] : memref<32x1xf32, #tpu.memory_space<vmem>>, vector<32x1xf32>
    %8 = vector.broadcast %7 : vector<32x1xf32> to vector<32x256xf32>
    %9 = arith.maximumf %6, %8 : vector<32x256xf32>
    %c0_7 = arith.constant 0 : index
    %c0_8 = arith.constant 0 : index
    %c0_9 = arith.constant 0 : index
    %c0_10 = arith.constant 0 : index
    %10 = vector.load %arg6[%c0_7, %c0_8, %c0_9, %c0_10] : memref<1x1x32x1xf32, #tpu.memory_space<vmem>>, vector<1x1x32x1xf32>
    %11 = vector.shape_cast %10 : vector<1x1x32x1xf32> to vector<32x1xf32>
    %cst_11 = arith.constant dense<0.000000e+00> : vector<32xf32>
    %12 = vector.multi_reduction <add>, %9, %cst_11 [1] : vector<32x256xf32> to vector<32xf32>
    %13 = vector.shape_cast %12 : vector<32xf32> to vector<32x1xf32>
    %14 = arith.addf %11, %13 : vector<32x1xf32>
    %c0_12 = arith.constant 0 : index
    %c0_13 = arith.constant 0 : index
    %c0_14 = arith.constant 0 : index
    %c0_15 = arith.constant 0 : index
    %15 = vector.load %arg6[%c0_12, %c0_13, %c0_14, %c0_15] : memref<1x1x32x1xf32, #tpu.memory_space<vmem>>, vector<1x1x32x1xf32>
    %16 = vector.shape_cast %15 : vector<1x1x32x1xf32> to vector<32x1xf32>
    %17 = vector.shape_cast %14 : vector<32x1xf32> to vector<1x1x32x1xf32>
    tpu.vector_store %arg6[%c0_12, %c0_13, %c0_14, %c0_15], %17 {strides = array<i32>} : memref<1x1x32x1xf32, #tpu.memory_space<vmem>>, vector<1x1x32x1xf32>,
    return
  }
  func.func @transform_0(%arg0: i32, %arg1: i32, %arg2: i32) -> (i32, i32, i32) {
    %c0_i32 = arith.constant 0 : i32
    %c0_i32_0 = arith.constant 0 : i32
    return %arg0, %c0_i32, %arg2 : i32, i32, i32
  }
  func.func @transform_1(%arg0: i32, %arg1: i32, %arg2: i32) -> (i32, i32) {
    %c0_i32 = arith.constant 0 : i32
    %c0_i32_0 = arith.constant 0 : i32
    %c0_i32_1 = arith.constant 0 : i32
    return %c0_i32, %c0_i32_0 : i32, i32
  }
  func.func @transform_2(%arg0: i32, %arg1: i32, %arg2: i32) -> (i32, i32) {
    %c0_i32 = arith.constant 0 : i32
    %c0_i32_0 = arith.constant 0 : i32
    %c0_i32_1 = arith.constant 0 : i32
    return %c0_i32, %c0_i32_0 : i32, i32
  }
  func.func @transform_3(%arg0: i32, %arg1: i32, %arg2: i32) -> (i32, i32, i32, i32) {
    %c0_i32 = arith.constant 0 : i32
    %c0_i32_0 = arith.constant 0 : i32
    %c0_i32_1 = arith.constant 0 : i32
    return %arg0, %arg1, %c0_i32, %c0_i32_0 : i32, i32, i32, i32
  }
}

module attributes {stable_mosaic.version = 11 : i64} {
  func.func @_heads_kernel(%arg0: i32, %arg1: memref<2x32xf32, #tpu.memory_space<vmem>>, %arg2: memref<32x20xf32, #tpu.memory_space<vmem>>, %arg3: memref<1x20xf32, #tpu.memory_space<vmem>>, %arg4: memref<2x20xf32, #tpu.memory_space<vmem>>) attributes {dimension_semantics = [#tpu.dimension_semantics<parallel>], iteration_bounds = array<i64: 1>, scalar_prefetch = 0 : i64, scratch_operands = 0 : i64, tpu.core_type = #tpu.core_type<tc>, window_params = [{transform_indices = @transform_0, window_bounds = array<i64: 2, 32>}, {pipeline_mode = #tpu.pipeline_mode<synchronous>, transform_indices = @transform_1, window_bounds = array<i64: 32, 20>}, {pipeline_mode = #tpu.pipeline_mode<synchronous>, transform_indices = @transform_2, window_bounds = array<i64: 1, 20>}, {transform_indices = @transform_3, window_bounds = array<i64: 2, 20>}]} {
    %c0 = arith.constant 0 : index
    %c0_0 = arith.constant 0 : index
    %0 = vector.load %arg1[%c0, %c0_0] : memref<2x32xf32, #tpu.memory_space<vmem>>, vector<2x32xf32>
    %c0_1 = arith.constant 0 : index
    %c0_2 = arith.constant 0 : index
    %1 = vector.load %arg2[%c0_1, %c0_2] : memref<32x20xf32, #tpu.memory_space<vmem>>, vector<32x20xf32>
    %cst = arith.constant dense<0.000000e+00> : vector<2x20xf32>
    %2 = tpu.matmul %0, %1, %cst {dimension_numbers = #tpu.dot_dimension_numbers<[1], [0], [0], [1], [0, 0, 1, 1], [], []>} : vector<2x32xf32>, vector<32x20xf32>, vector<2x20xf32> -> vector<2x20xf32>
    %c0_3 = arith.constant 0 : index
    %c0_4 = arith.constant 0 : index
    %3 = vector.load %arg3[%c0_3, %c0_4] : memref<1x20xf32, #tpu.memory_space<vmem>>, vector<1x20xf32>
    %4 = vector.broadcast %3 : vector<1x20xf32> to vector<2x20xf32>
    %5 = arith.addf %2, %4 : vector<2x20xf32>
    %c0_5 = arith.constant 0 : index
    %c0_6 = arith.constant 0 : index
    %6 = vector.load %arg4[%c0_5, %c0_6] : memref<2x20xf32, #tpu.memory_space<vmem>>, vector<2x20xf32>
    tpu.vector_store %arg4[%c0_5, %c0_6], %5 {strides = array<i32>} : memref<2x20xf32, #tpu.memory_space<vmem>>, vector<2x20xf32>,
    return
  }
  func.func @transform_0(%arg0: i32) -> (i32, i32) {
    %c0_i32 = arith.constant 0 : i32
    %c0_i32_0 = arith.constant 0 : i32
    return %arg0, %c0_i32 : i32, i32
  }
  func.func @transform_1(%arg0: i32) -> (i32, i32) {
    %c0_i32 = arith.constant 0 : i32
    %c0_i32_0 = arith.constant 0 : i32
    %c0_i32_1 = arith.constant 0 : i32
    return %c0_i32, %c0_i32_0 : i32, i32
  }
  func.func @transform_2(%arg0: i32) -> (i32, i32) {
    %c0_i32 = arith.constant 0 : i32
    %c0_i32_0 = arith.constant 0 : i32
    %c0_i32_1 = arith.constant 0 : i32
    return %c0_i32, %c0_i32_0 : i32, i32
  }
  func.func @transform_3(%arg0: i32) -> (i32, i32) {
    %c0_i32 = arith.constant 0 : i32
    %c0_i32_0 = arith.constant 0 : i32
    return %arg0, %c0_i32 : i32, i32
  }
}

</mosaic_0001>

<llo_original>
// kernel: clustering_model_forward.3
$region0: #{clustering_model_forward.3}
  #allocation0 [shape = 'u32[]', space=smem, size = 0x4, offset = 0x4, fixed_abs, tag = 'smem constant byte address 0x4 - core index']
  #allocation1 [shape = 'u32[144,128]{1,0:T(1,128)}', space=vmem, size = 0x12000, scoped, tag = 'internal scratch']
  %s0 = inlined_call_operand.vmem [shape: f32[2,32], index: 0, kind: input, shape index: {}]
  %s1 = inlined_call_operand.vmem [shape: f32[32,20], index: 1, kind: input, shape index: {}]
  %s2 = inlined_call_operand.vmem [shape: f32[1,20], index: 2, kind: input, shape index: {}]
  %s3 = inlined_call_operand.vmem [shape: f32[2,20], index: 3, kind: output, shape index: {}]
  %s4 = sld [smem:[#allocation0]]
  $region22: #{clustering_model_forward.3} parent=0
    _
  %s6 = ssub.s32 1, %s4
  %s7 = scalar_select 0, %s6, %s4
  // Predicated region
  $region2: #{clustering_model_forward.3} parent=0 // pred_check
    _
  $region3: #{clustering_model_forward.3} parent=0 // pred_check_branch
    %9 = sbr.rel (0) target = $region5
  $region4: #{clustering_model_forward.3} parent=0 // pred_region
    _
  $region5: #{clustering_model_forward.3} parent=0 // pred_fallthru
    _
  // Predicated region
  $region6: #{clustering_model_forward.3} parent=0 // pred_check
    _
  $region7: #{clustering_model_forward.3} parent=0 // pred_check_branch
    %11 = sbr.rel (0) target = $region9
  $region8: #{clustering_model_forward.3} parent=0 // pred_region
    _
  $region9: #{clustering_model_forward.3} parent=0 // pred_fallthru
    _
  // Predicated region
  $region10: #{clustering_model_forward.3} parent=0 // pred_check
    _
  $region11: #{clustering_model_forward.3} parent=0 // pred_check_branch
    %13 = sbr.rel (0) target = $region13
  $region12: #{clustering_model_forward.3} parent=0 // pred_region
    _
  $region13: #{clustering_model_forward.3} parent=0 // pred_fallthru
    _
  %v14 = vld [vmem:[%s0] sm:$0x3]
  %v15 = vld [vmem:[%s1] sm:$0xff]
  %v16 = vld [vmem:[%s1 + $0x8] sm:$0xff]
  %v17 = vld [vmem:[%s1 + $0x10] sm:$0xff]
  %v18 = vld [vmem:[%s1 + $0x18] sm:$0xff]
  %v19 = vld [vmem:[%s2] sm:$0x1]
  %v21 = vlaneseq
  %v22 = vshrl.u32 %v21, 7
  %v23 = vsub.s32 0, %v22
  %v24 = vrot.slane %v19, %v23
  %vm26 = vcmask 261120
  %v28 = vsel %vm26, %v14, 0
  %30 = vmatprep.subr.mxu0 0.0
  %31 = vmatpush1.msra.mxu0 %v15
  %32 = vmatprep.subr.mxu0 0.0
  %33 = vmatpush1.msra.mxu0 %v16
  %34 = vmatprep.subr.mxu0 0.0
  %35 = vmatpush1.msra.mxu0 %v17
  %36 = vmatprep.subr.mxu0 0.0
  %37 = vmatpush1.msra.mxu0 %v18
  %38 = vmatprep.subr.mxu0 0.0
  %39 = vmatpush1.msra.mxu0 0.0
  %40 = vmatprep.subr.mxu0 0.0
  %41 = vmatpush1.msra.mxu0 0.0
  %42 = vmatprep.subr.mxu0 0.0
  %43 = vmatpush1.msra.mxu0 0.0
  %44 = vmatprep.subr.mxu0 0.0
  %45 = vmatpush1.msra.mxu0 0.0
  %46 = vmatprep.subr.mxu0 0.0
  %47 = vmatpush1.msra.mxu0 0.0
  %48 = vmatprep.subr.mxu0 0.0
  %49 = vmatpush1.msra.mxu0 0.0
  %50 = vmatprep.subr.mxu0 0.0
  %51 = vmatpush1.msra.mxu0 0.0
  %52 = vmatprep.subr.mxu0 0.0
  %53 = vmatpush1.msra.mxu0 0.0
  %54 = vmatprep.subr.mxu0 0.0
  %55 = vmatpush1.msra.mxu0 0.0
  %56 = vmatprep.subr.mxu0 0.0
  %57 = vmatpush1.msra.mxu0 0.0
  %58 = vmatprep.subr.mxu0 0.0
  %59 = vmatpush1.msra.mxu0 0.0
  %60 = vmatprep.subr.mxu0 0.0
  %61 = vmatpush1.msra.mxu0 0.0
  %62 = vmatprep.subr.mxu0 0.0
  %63 = vmatpush1.msra.mxu0 0.0
  %64 = vmatprep.subr.mxu0 0.0
  %65 = vmatpush1.msra.mxu0 0.0
  %66 = vmatprep.subr.mxu0 0.0
  %67 = vmatpush1.msra.mxu0 0.0
  %68 = vmatprep.subr.mxu0 0.0
  %69 = vmatpush1.msra.mxu0 0.0
  %70 = vmatprep.subr.mxu0 0.0
  %71 = vmatpush1.msra.mxu0 0.0
  %72 = vmatprep.subr.mxu0 0.0
  %73 = vmatpush1.msra.mxu0 0.0
  %74 = vmatprep.subr.mxu0 0.0
  %75 = vmatpush1.msra.mxu0 0.0
  %76 = vmatprep.subr.mxu0 0.0
  %77 = vmatpush1.msra.mxu0 0.0
  %78 = vmatprep.subr.mxu0 0.0
  %79 = vmatpush1.msra.mxu0 0.0
  %80 = vmatprep.subr.mxu0 0.0
  %81 = vmatpush1.msra.mxu0 0.0
  %82 = vmatprep.subr.mxu0 0.0
  %83 = vmatpush1.msra.mxu0 0.0
  %84 = vmatprep.subr.mxu0 0.0
  %85 = vmatpush1.msra.mxu0 0.0
  %86 = vmatprep.subr.mxu0 0.0
  %87 = vmatpush1.msra.mxu0 0.0
  %88 = vmatprep.subr.mxu0 0.0
  %89 = vmatpush1.msra.mxu0 0.0
  %90 = vmatprep.subr.mxu0 0.0
  %91 = vmatpush1.msra.mxu0 0.0
  %92 = vmatprep.subr.mxu0 0.0
  %93 = vmatpush1.msra.mxu0 0.0
  %94 = vmatprep.mubr.f32.mxu0 0.0
  %95 = vmatmul.mubr.f32.gmra.mrb[0].mxu0 %v28
  %v96 = vpop.f32.mrb[0].mxu0
  %v97 = vadd.f32 %v24, %v96
  %v98 = vpop.f32.mrb[0].mxu0
  %99 = vdwg.mxu0
  %vm100 = vcmask 156672
  %101 = vst.msk [vmem:[%s3] sm:$0x3] %vm100, %v97
  // Predicated region
  $region14: #{clustering_model_forward.3} parent=0 // pred_check
    _
  $region15: #{clustering_model_forward.3} parent=0 // pred_check_branch
    %103 = sbr.rel (0) target = $region17
  $region16: #{clustering_model_forward.3} parent=0 // pred_region
    _
  $region17: #{clustering_model_forward.3} parent=0 // pred_fallthru
    _
  // Predicated region
  $region18: #{clustering_model_forward.3} parent=0 // pred_check
    _
  $region19: #{clustering_model_forward.3} parent=0 // pred_check_branch
    %105 = sbr.rel (0) target = $region21
  $region20: #{clustering_model_forward.3} parent=0 // pred_region
    _
  $region21: #{clustering_model_forward.3} parent=0 // pred_fallthru
    _

// kernel: clustering_model_forward.2
$region0: #{clustering_model_forward.2}
  #allocation0 [shape = 'u32[]', space=smem, size = 0x4, offset = 0x4, fixed_abs, tag = 'smem constant byte address 0x4 - core index']
  #allocation1 [shape = 'u32[144,128]{1,0:T(1,128)}', space=vmem, size = 0x12000, scoped, tag = 'internal scratch']
  %s0 = inlined_call_operand.vmem [shape: f32[2,4,256], index: 0, kind: input, shape index: {}]
  %s1 = inlined_call_operand.vmem [shape: f32[32,4], index: 1, kind: input, shape index: {}]
  %s2 = inlined_call_operand.vmem [shape: f32[32,1], index: 2, kind: input, shape index: {}]
  %s3 = inlined_call_operand.vmem [shape: f32[2,1,32,1], index: 3, kind: output, shape index: {}]
  %s4 = sld [smem:[#allocation0]]
  $region49: #{clustering_model_forward.2} parent=0
    _
  %s6 = ssub.s32 1, %s4
  %s7 = scalar_select 0, %s6, %s4
  loop: start=0, step=1, limit=4
  $region2: #{clustering_model_forward.2} parent=0 // loop_pre_header
    _
  $region3: #{clustering_model_forward.2} parent=0 // loop_header
    %s9 = sphi 0, %s13
    %p10 = scmp.ge.s32.totalorder %s9, 4
    %s16 = sphi 0, %s35
    %s17 = sphi 0, %s31
    %s18 = sphi 0, %s27
    %s19 = sphi 0, %s16
    %s20 = sphi 0, %s17
    %s21 = sphi 0, %s18
    %s22 = sphi 0, %s19
    %s23 = sphi 0, %s20
    %s24 = sphi 0, %s21
    %s40 = sphi 0, %s42
    %s43 = sphi 0, %s40
    %s44 = sphi 0, %s43
    %s60 = sphi 0, %s44
    %s64 = sphi 0, %s64
    %s66 = sphi 0, %s64
    %s67 = sphi 0, %s66
    %s81 = sphi 0, %s67
    %s85 = sphi 0, %s85
    %s87 = sphi 0, %s85
    %s88 = sphi 0, %s87
    %s102 = sphi 0, %s88
    %s110 = sphi 0, %s112
    %s113 = sphi 0, %s110
    %s114 = sphi 0, %s113
    %s130 = sphi 0, %s114
  $region4: #{clustering_model_forward.2} parent=0 // loop_header_branch
    %12 = sbr.rel (%p10) target = $region8
  $region5: #{clustering_model_forward.2} parent=0 // loop_body
    %s14 = ssub.s32 %s9, 1
    %s15 = ssub.s32 %s9, 2
    %s25 = sadd.s32 1, %s18
    %p26 = scmp.ge.s32.totalorder %s25, 1
    %s27 = scalar_select %p26, 0, %s25
    %s28 = sadd.s32 1, %s17
    %s29 = scalar_select %p26, %s28, %s17
    %p30 = scmp.ge.s32.totalorder %s29, 1
    %s31 = scalar_select %p30, 0, %s29
    %s32 = sadd.s32 1, %s16
    %s33 = scalar_select %p30, %s32, %s16
    %p34 = scmp.ge.s32.totalorder %s33, 2
    %s35 = scalar_select %p34, 0, %s33
    %s36 = ssub.s32 %s16, %s35
    %s37 = ssub.s32 %s18, %s27
    %s38 = sor.u32 %s36, %s37
    %p39 = scmp.eq.s32.totalorder %s38, 0
    %s41 = sadd.s32 %s40, 1
    %s42 = scalar_select %p39, %s40, %s41
    %p45 = pneg %p39
    %p46 = scmp.eq.s32.totalorder %s9, 1
    %p47 = por %p45, %p46
    %p48 = scmp.ne.s32.totalorder %s40, %s43
    %p49 = scmp.eq.s32.totalorder %s9, 0
    %p50 = por %p48, %p49
    %p51 = scmp.ne.s32.totalorder %s40, %s43
    %p52 = scmp.eq.s32.totalorder %s14, 1
    %p53 = por %p51, %p52
    %p54 = scmp.ne.s32.totalorder %s43, %s44
    %p55 = scmp.eq.s32.totalorder %s14, 0
    %p56 = por %p54, %p55
    %p57 = scmp.ne.s32.totalorder %s43, %s44
    %p58 = scmp.eq.s32.totalorder %s15, 1
    %p59 = por %p57, %p58
    %p61 = scmp.ne.s32.totalorder %s44, %s60
    %p62 = scmp.eq.s32.totalorder %s15, 0
    %p63 = por %p61, %p62
    %s65 = sadd.s32 %s64, 1
    %p68 = scmp.eq.s32.totalorder %s9, 1
    %p69 = scmp.ne.s32.totalorder %s64, %s66
    %p70 = scmp.eq.s32.totalorder %s9, 0
    %p71 = por %p69, %p70
    %p72 = scmp.ne.s32.totalorder %s64, %s66
    %p73 = scmp.eq.s32.totalorder %s14, 1
    %p74 = por %p72, %p73
    %p75 = scmp.ne.s32.totalorder %s66, %s67
    %p76 = scmp.eq.s32.totalorder %s14, 0
    %p77 = por %p75, %p76
    %p78 = scmp.ne.s32.totalorder %s66, %s67
    %p79 = scmp.eq.s32.totalorder %s15, 1
    %p80 = por %p78, %p79
    %p82 = scmp.ne.s32.totalorder %s67, %s81
    %p83 = scmp.eq.s32.totalorder %s15, 0
    %p84 = por %p82, %p83
    %s86 = sadd.s32 %s85, 1
    %p89 = scmp.eq.s32.totalorder %s9, 1
    %p90 = scmp.ne.s32.totalorder %s85, %s87
    %p91 = scmp.eq.s32.totalorder %s9, 0
    %p92 = por %p90, %p91
    %p93 = scmp.ne.s32.totalorder %s85, %s87
    %p94 = scmp.eq.s32.totalorder %s14, 1
    %p95 = por %p93, %p94
    %p96 = scmp.ne.s32.totalorder %s87, %s88
    %p97 = scmp.eq.s32.totalorder %s14, 0
    %p98 = por %p96, %p97
    %p99 = scmp.ne.s32.totalorder %s87, %s88
    %p100 = scmp.eq.s32.totalorder %s15, 1
    %p101 = por %p99, %p100
    %p103 = scmp.ne.s32.totalorder %s88, %s102
    %p104 = scmp.eq.s32.totalorder %s15, 0
    %p105 = por %p103, %p104
    %s106 = ssub.s32 %s16, %s35
    %s107 = ssub.s32 %s17, %s31
    %s108 = sor.u32 %s106, %s107
    %p109 = scmp.eq.s32.totalorder %s108, 0
    %s111 = sadd.s32 %s110, 1
    %s112 = scalar_select %p109, %s110, %s111
    %p115 = pneg %p109
    %p116 = scmp.eq.s32.totalorder %s9, 1
    %p117 = por %p115, %p116
    %p118 = scmp.ne.s32.totalorder %s110, %s113
    %p119 = scmp.eq.s32.totalorder %s9, 0
    %p120 = por %p118, %p119
    %p121 = scmp.ne.s32.totalorder %s110, %s113
    %p122 = scmp.eq.s32.totalorder %s14, 1
    %p123 = por %p121, %p122
    %p124 = scmp.ne.s32.totalorder %s113, %s114
    %p125 = scmp.eq.s32.totalorder %s14, 0
    %p126 = por %p124, %p125
    %p127 = scmp.ne.s32.totalorder %s113, %s114
    %p128 = scmp.eq.s32.totalorder %s15, 1
    %p129 = por %p127, %p128
    %p131 = scmp.ne.s32.totalorder %s114, %s130
    %p132 = scmp.eq.s32.totalorder %s15, 0
    %p133 = por %p131, %p132
    %p134 = scmp.le.s32.totalorder 1, %s9
    %p135 = scmp.lt.s32.totalorder %s9, 3
    %p136 = pnand %p134, %p135
    %p137 = pneg %p136
    // Predicated region
    $region9: #{clustering_model_forward.2} parent=5 // pred_check
      _
    $region10: #{clustering_model_forward.2} parent=5 // pred_check_branch
      %139 = sbr.rel (%p136) target = $region12
    $region11: #{clustering_model_forward.2} parent=5 // pred_region
      %s140 = ssub.s32 %s9, 1
      // Predicated region
      $region13: #{clustering_model_forward.2} parent=11 // pred_check
        %p141 = pneg %p77
      $region14: #{clustering_model_forward.2} parent=11 // pred_check_branch
        %143 = sbr.rel (%p141) target = $region16
      $region15: #{clustering_model_forward.2} parent=11 // pred_region
        _
      $region16: #{clustering_model_forward.2} parent=11 // pred_fallthru
        _
      // Predicated region
      $region17: #{clustering_model_forward.2} parent=11 // pred_check
        %p144 = pneg %p98
      $region18: #{clustering_model_forward.2} parent=11 // pred_check_branch
        %146 = sbr.rel (%p144) target = $region20
      $region19: #{clustering_model_forward.2} parent=11 // pred_region
        _
      $region20: #{clustering_model_forward.2} parent=11 // pred_fallthru
        _
    $region12: #{clustering_model_forward.2} parent=5 // pred_fallthru
      _
    %p147 = scmp.lt.s32.totalorder %s9, 2
    // Predicated region
    $region21: #{clustering_model_forward.2} parent=5 // pred_check
      %p148 = pneg %p147
    $region22: #{clustering_model_forward.2} parent=5 // pred_check_branch
      %150 = sbr.rel (%p148) target = $region24
    $region23: #{clustering_model_forward.2} parent=5 // pred_region
      // Predicated region
      $region25: #{clustering_model_forward.2} parent=23 // pred_check
        %p151 = pneg %p50
      $region26: #{clustering_model_forward.2} parent=23 // pred_check_branch
        %153 = sbr.rel (%p151) target = $region28
      $region27: #{clustering_model_forward.2} parent=23 // pred_region
        %s154 = smul.u32 2, %s18
        %p155 = scmp.lt.s32.totalorder %s16, 1
        %s156 = scalar_select %p155, %s16, 1
        %p157 = scmp.lt.s32.totalorder %s154, 1
        %s158 = scalar_select %p157, %s154, 1
        %s159 = smul.addr %s156, 2
        %s160 = sadd.s32 %s158, %s159
        %s161 = smul.addr %s160, 4
        %s162 = scalar_lea.vmem %s0, %s161
        %s163 = smul.u32 2, %s18
      $region28: #{clustering_model_forward.2} parent=23 // pred_fallthru
        _
    $region24: #{clustering_model_forward.2} parent=5 // pred_fallthru
      _
    %p164 = scmp.le.s32.totalorder 1, %s9
    %p165 = scmp.lt.s32.totalorder %s9, 3
    %p166 = pnand %p164, %p165
    %p167 = pneg %p166
    // Predicated region
    $region29: #{clustering_model_forward.2} parent=5 // pred_check
      _
    $region30: #{clustering_model_forward.2} parent=5 // pred_check_branch
      %169 = sbr.rel (%p166) target = $region32
    $region31: #{clustering_model_forward.2} parent=5 // pred_region
      %s170 = ssub.s32 %s9, 1
      %s171 = smul.u32 2, %s21
      %p172 = scmp.lt.s32.totalorder %s19, 1
      %s173 = scalar_select %p172, %s19, 1
      %p174 = scmp.lt.s32.totalorder %s171, 1
      %s175 = scalar_select %p174, %s171, 1
      %s176 = smul.addr %s173, 2
      %s177 = sadd.s32 %s175, %s176
      %s178 = smul.addr %s177, 4
      %s179 = scalar_lea.vmem %s0, %s178
      %p180 = pneg %p56
      %p181 = pneg %p53
      %p182 = pneg %p77
      %p183 = pneg %p74
      %p184 = pneg %p98
      %p185 = pneg %p95
      %p186 = pneg %p126
      %p187 = pneg %p123
      %p188 = scmp.lt.s32.totalorder %s19, 1
      %s189 = scalar_select %p188, %s19, 1
      %p190 = scmp.lt.s32.totalorder %s20, 0
      %s191 = scalar_select %p190, %s20, 0
      %s192 = smul.addr %s191, 4
      %s193 = smul.addr %s189, 4
      %s194 = sadd.s32 %s192, %s193
      %s195 = smul.addr %s194, 8
      %s196 = scalar_lea.vmem %s3, %s195
      %s197 = smul.u32 2, %s21
      %p198 = scmp.lt.s32.totalorder %s19, 1
      %s199 = scalar_select %p198, %s19, 1
      %p200 = scmp.lt.s32.totalorder %s197, 1
      %s201 = scalar_select %p200, %s197, 1
      %s202 = smul.addr %s199, 2
      %s203 = sadd.s32 %s201, %s202
      %s204 = smul.addr %s203, 4
      %s205 = scalar_lea.vmem %s0, %s204
      %s206 = smul.u32 2, %s21
      %p207 = scmp.lt.s32.totalorder %s19, 1
      %s208 = scalar_select %p207, %s19, 1
      %p209 = scmp.lt.s32.totalorder %s20, 0
      %s210 = scalar_select %p209, %s20, 0
      %s211 = smul.addr %s210, 4
      %s212 = smul.addr %s208, 4
      %s213 = sadd.s32 %s211, %s212
      %s214 = smul.addr %s213, 8
      %s215 = scalar_lea.vmem %s3, %s214
      %p216 = scmp.eq.s32.totalorder %s21, 0
      // Predicated region
      $region33: #{clustering_model_forward.2} parent=31 // pred_check
        %p217 = pneg %p216
      $region34: #{clustering_model_forward.2} parent=31 // pred_check_branch
        %219 = sbr.rel (%p217) target = $region36
      $region35: #{clustering_model_forward.2} parent=31 // pred_region
        %vm220 = vcmask 7168
        %221 = vst.msk [vmem:[%s215] sm:$0xff] %vm220, 0.0
        %222 = vst.msk [vmem:[%s215 + $0x8] sm:$0xff] %vm220, 0.0
        %223 = vst.msk [vmem:[%s215 + $0x10] sm:$0xff] %vm220, 0.0
        %224 = vst.msk [vmem:[%s215 + $0x18] sm:$0xff] %vm220, 0.0
      $region36: #{clustering_model_forward.2} parent=31 // pred_fallthru
        _
      %v225 = vld [vmem:[%s1] sm:$0xff]
      %v226 = vld [vmem:[%s1 + $0x8] sm:$0xff]
      %v227 = vld [vmem:[%s1 + $0x10] sm:$0xff]
      %v228 = vld [vmem:[%s1 + $0x18] sm:$0xff]
      %v229 = vld [vmem:[%s205] sm:$0xff]
      %v231 = vcombine.high %v229, %v229
      %vm232 = vcmask 31744
      %v234 = vsel %vm232, %v225, 0
      %v237 = vsel %vm232, %v226, 0
      %v240 = vsel %vm232, %v227, 0
      %v243 = vsel %vm232, %v228, 0
      %vm245 = vcmask 1043456
      %v246 = vsel %vm245, %v229, 0
      %v248 = vsel %vm245, %v231, 0
      %250 = vmatprep.subr.mxu0 %v248
      %251 = vmatpush1.msra.mxu0 %v246
      %252 = vmatprep.subr.mxu0 0.0
      %253 = vmatpush1.msra.mxu0 0.0
      %254 = vmatprep.subr.mxu0 0.0
      %255 = vmatpush1.msra.mxu0 0.0
      %256 = vmatprep.subr.mxu0 0.0
      %257 = vmatpush1.msra.mxu0 0.0
      %258 = vmatprep.subr.mxu0 0.0
      %259 = vmatpush1.msra.mxu0 0.0
      %260 = vmatprep.subr.mxu0 0.0
      %261 = vmatpush1.msra.mxu0 0.0
      %262 = vmatprep.subr.mxu0 0.0
      %263 = vmatpush1.msra.mxu0 0.0
      %264 = vmatprep.subr.mxu0 0.0
      %265 = vmatpush1.msra.mxu0 0.0
      %266 = vmatprep.subr.mxu0 0.0
      %267 = vmatpush1.msra.mxu0 0.0
      %268 = vmatprep.subr.mxu0 0.0
      %269 = vmatpush1.msra.mxu0 0.0
      %270 = vmatprep.subr.mxu0 0.0
      %271 = vmatpush1.msra.mxu0 0.0
      %272 = vmatprep.subr.mxu0 0.0
      %273 = vmatpush1.msra.mxu0 0.0
      %274 = vmatprep.subr.mxu0 0.0
      %275 = vmatpush1.msra.mxu0 0.0
      %276 = vmatprep.subr.mxu0 0.0
      %277 = vmatpush1.msra.mxu0 0.0
      %278 = vmatprep.subr.mxu0 0.0
      %279 = vmatpush1.msra.mxu0 0.0
      %280 = vmatprep.subr.mxu0 0.0
      %281 = vmatpush1.msra.mxu0 0.0
      %282 = vmatprep.subr.mxu0 0.0
      %283 = vmatpush1.msra.mxu0 0.0
      %284 = vmatprep.subr.mxu0 0.0
      %285 = vmatpush1.msra.mxu0 0.0
      %286 = vmatprep.subr.mxu0 0.0
      %287 = vmatpush1.msra.mxu0 0.0
      %288 = vmatprep.subr.mxu0 0.0
      %289 = vmatpush1.msra.mxu0 0.0
      %290 = vmatprep.subr.mxu0 0.0
      %291 = vmatpush1.msra.mxu0 0.0
      %292 = vmatprep.subr.mxu0 0.0
      %293 = vmatpush1.msra.mxu0 0.0
      %294 = vmatprep.subr.mxu0 0.0
      %295 = vmatpush1.msra.mxu0 0.0
      %296 = vmatprep.subr.mxu0 0.0
      %297 = vmatpush1.msra.mxu0 0.0
      %298 = vmatprep.subr.mxu0 0.0
      %299 = vmatpush1.msra.mxu0 0.0
      %300 = vmatprep.subr.mxu0 0.0
      %301 = vmatpush1.msra.mxu0 0.0
      %302 = vmatprep.subr.mxu0 0.0
      %303 = vmatpush1.msra.mxu0 0.0
      %304 = vmatprep.subr.mxu0 0.0
      %305 = vmatpush1.msra.mxu0 0.0
      %306 = vmatprep.subr.mxu0 0.0
      %307 = vmatpush1.msra.mxu0 0.0
      %308 = vmatprep.subr.mxu0 0.0
      %309 = vmatpush1.msra.mxu0 0.0
      %310 = vmatprep.subr.mxu0 0.0
      %311 = vmatpush1.msra.mxu0 0.0
      %312 = vmatprep.subr.mxu0 0.0
      %313 = vmatpush1.msra.mxu0 0.0
      %314 = vmatprep.mubr.f32.mxu0 0.0
      %315 = vmatmul.mubr.f32.gmra.mrb[0].mxu0 %v234
      %v316 = vpop.f32.mrb[0].mxu0
      %v317 = vadd.f32 0.0, %v316
      %v318 = vpop.f32.mrb[0].mxu0
      %v319 = vadd.f32 0.0, %v318
      %320 = vmatprep.mubr.f32.mxu0 0.0
      %321 = vmatmul.mubr.f32.gmra.mrb[0].mxu0 %v237
      %v322 = vpop.f32.mrb[0].mxu0
      %v323 = vadd.f32 0.0, %v322
      %v324 = vpop.f32.mrb[0].mxu0
      %v325 = vadd.f32 0.0, %v324
      %326 = vmatprep.mubr.f32.mxu0 0.0
      %327 = vmatmul.mubr.f32.gmra.mrb[0].mxu0 %v240
      %v328 = vpop.f32.mrb[0].mxu0
      %v329 = vadd.f32 0.0, %v328
      %v330 = vpop.f32.mrb[0].mxu0
      %v331 = vadd.f32 0.0, %v330
      %332 = vmatprep.mubr.f32.mxu0 0.0
      %333 = vmatmul.mubr.f32.gmra.mrb[0].mxu0 %v243
      %v334 = vpop.f32.mrb[0].mxu0
      %v335 = vadd.f32 0.0, %v334
      %v336 = vpop.f32.mrb[0].mxu0
      %v337 = vadd.f32 0.0, %v336
      %338 = vdwg.mxu0
      %v339 = vld [vmem:[%s2] sm:$0xff]
      %v340 = vld [vmem:[%s2 + $0x8] sm:$0xff]
      %v341 = vld [vmem:[%s2 + $0x10] sm:$0xff]
      %v342 = vld [vmem:[%s2 + $0x18] sm:$0xff]
      %344 = vset.pattern.permute.xlu0 0
      %345 = vperm.xlu0 %344, %v339
      %v346 = vpop.permute.xlu0 %345
      %349 = vset.pattern.permute.xlu0 0
      %350 = vperm.xlu0 %349, %v340
      %v351 = vpop.permute.xlu0 %350
      %354 = vset.pattern.permute.xlu0 0
      %355 = vperm.xlu0 %354, %v341
      %v356 = vpop.permute.xlu0 %355
      %359 = vset.pattern.permute.xlu0 0
      %360 = vperm.xlu0 %359, %v342
      %v361 = vpop.permute.xlu0 %360
      %v363 = vmax.f32 %v317, %v346
      %v364 = vmax.f32 %v319, %v346
      %v365 = vmax.f32 %v323, %v351
      %v366 = vmax.f32 %v325, %v351
      %v367 = vmax.f32 %v329, %v356
      %v368 = vmax.f32 %v331, %v356
      %v369 = vmax.f32 %v335, %v361
      %v370 = vmax.f32 %v337, %v361
      %v371 = vld [vmem:[%s215] sm:$0xff]
      %v372 = vld [vmem:[%s215 + $0x8] sm:$0xff]
      %v373 = vld [vmem:[%s215 + $0x10] sm:$0xff]
      %v374 = vld [vmem:[%s215 + $0x18] sm:$0xff]
      %v375 = vadd.f32 %v363, %v364
      %376 = vadd.xlane.f32.xlu0 %v375
      %v377 = vpop.xlane.xlu0 %376
      %v378 = vadd.f32 %v365, %v366
      %379 = vadd.xlane.f32.xlu0 %v378
      %v380 = vpop.xlane.xlu0 %379
      %v381 = vadd.f32 %v367, %v368
      %382 = vadd.xlane.f32.xlu0 %v381
      %v383 = vpop.xlane.xlu0 %382
      %v384 = vadd.f32 %v369, %v370
      %385 = vadd.xlane.f32.xlu0 %v384
      %v386 = vpop.xlane.xlu0 %385
      %v387 = vadd.f32 %v371, %v377
      %v388 = vadd.f32 %v372, %v380
      %v389 = vadd.f32 %v373, %v383
      %v390 = vadd.f32 %v374, %v386
      %vm391 = vcmask 7168
      %392 = vst.msk [vmem:[%s215] sm:$0xff] %vm391, %v387
      %393 = vst.msk [vmem:[%s215 + $0x8] sm:$0xff] %vm391, %v388
      %394 = vst.msk [vmem:[%s215 + $0x10] sm:$0xff] %vm391, %v389
      %395 = vst.msk [vmem:[%s215 + $0x18] sm:$0xff] %vm391, %v390
      %p396 = scmp.lt.s32.totalorder %s19, 1
      %s397 = scalar_select %p396, %s19, 1
      %p398 = scmp.lt.s32.totalorder %s20, 0
      %s399 = scalar_select %p398, %s20, 0
      %s400 = smul.addr %s399, 4
      %s401 = smul.addr %s397, 4
      %s402 = sadd.s32 %s400, %s401
      %s403 = smul.addr %s402, 8
      %s404 = scalar_lea.vmem %s3, %s403
      // Predicated region
      $region37: #{clustering_model_forward.2} parent=31 // pred_check
        %p405 = pneg %p123
      $region38: #{clustering_model_forward.2} parent=31 // pred_check_branch
        %407 = sbr.rel (%p405) target = $region40
      $region39: #{clustering_model_forward.2} parent=31 // pred_region
        _
      $region40: #{clustering_model_forward.2} parent=31 // pred_fallthru
        _
    $region32: #{clustering_model_forward.2} parent=5 // pred_fallthru
      _
    %p408 = scmp.le.s32.totalorder 2, %s9
    // Predicated region
    $region41: #{clustering_model_forward.2} parent=5 // pred_check
      %p409 = pneg %p408
    $region42: #{clustering_model_forward.2} parent=5 // pred_check_branch
      %411 = sbr.rel (%p409) target = $region44
    $region43: #{clustering_model_forward.2} parent=5 // pred_region
      %s412 = ssub.s32 %s9, 2
      // Predicated region
      $region45: #{clustering_model_forward.2} parent=43 // pred_check
        %p413 = pneg %p129
      $region46: #{clustering_model_forward.2} parent=43 // pred_check_branch
        %415 = sbr.rel (%p413) target = $region48
      $region47: #{clustering_model_forward.2} parent=43 // pred_region
        %p416 = scmp.lt.s32.totalorder %s22, 1
        %s417 = scalar_select %p416, %s22, 1
        %p418 = scmp.lt.s32.totalorder %s23, 0
        %s419 = scalar_select %p418, %s23, 0
        %s420 = smul.addr %s419, 4
        %s421 = smul.addr %s417, 4
        %s422 = sadd.s32 %s420, %s421
        %s423 = smul.addr %s422, 8
        %s424 = scalar_lea.vmem %s3, %s423
      $region48: #{clustering_model_forward.2} parent=43 // pred_fallthru
        _
    $region44: #{clustering_model_forward.2} parent=5 // pred_fallthru
      _
  $region6: #{clustering_model_forward.2} parent=0 // loop_footer
    %s13 = sadd.s32 1, %s9
  $region7: #{clustering_model_forward.2} parent=0 // loop_footer_branch
    %8 = sbr.rel target = $region3
  $region8: #{clustering_model_forward.2} parent=0 // loop_exit
    _

</llo_original>
